<compile_context>
chip_gen: v7x
topology: tpu7x:2x2x1
jax: 0.10.0
libtpu: 0.0.40
codegen_flags: <defaults>
</compile_context>

<pallas_src>
import functools

import jax
import jax.numpy as jnp
from jax import lax
from jax.experimental import pallas as pl
from jax.experimental.pallas import tpu as pltpu

_TB_MAX = 2048  # rows per x tile: 2048*D*4B per buffer, well under scoped VMEM even on v7x


def _round_up(x, m):
    return ((x + m - 1) // m) * m


def linear_kernel(x_ref, w_ref, b_ref, o_ref):
    # x: (TB, D) VMEM, w: (1, D) VMEM (lane-major), b: (1,) SMEM, o: (1, TB) VMEM (lane-dense).
    prod = x_ref[...] * w_ref[...]                 # VPU fmul, weight row broadcast over batch rows
    s = jnp.sum(prod, axis=1)                      # XLU cross-lane reduce -> (TB,)
    o_ref[...] = (s + b_ref[0]).reshape(1, -1).astype(o_ref.dtype)


def linear_mse_kernel(x_ref, w_ref, b_ref, y_ref, sse_ref, *, batch, tb):
    # Accumulate masked sum of squared errors into a resident SMEM scalar.
    i = pl.program_id(0)

    @pl.when(i == 0)
    def _():
        sse_ref[0, 0] = 0.0

    pred = jnp.sum(x_ref[...] * w_ref[...], axis=1, keepdims=True) + b_ref[0]   # (TB, 1)
    diff = pred - y_ref[...].astype(jnp.float32)
    row = i * tb + lax.broadcasted_iota(jnp.int32, (tb, 1), 0)
    diff = jnp.where(row < batch, diff, 0.0)       # mask padded rows of the last tile
    sse_ref[0, 0] += jnp.sum(diff * diff)


def torch_model_forward(x, weight, bias, y=None):
    """Equivalent of TorchModel.forward.

    x:      [B, D] float32
    weight: [1, D] float32   (nn.Linear.weight layout, out_features=1)
    bias:   [1]    float32
    y:      optional [B, 1] float32 target -> scalar MSE loss
    """
    B, D = x.shape
    w_row = weight.reshape(1, D).astype(jnp.float32)
    b1 = bias.reshape(1).astype(jnp.float32)

    tb = min(_TB_MAX, _round_up(B, 8))
    nt = pl.cdiv(B, tb)
    bp = nt * tb
    if bp != B:  # pad batch so every tile is full; padded rows are masked / sliced off
        x = jnp.pad(x, ((0, bp - B), (0, 0)))
        if y is not None:
            y = jnp.pad(y, ((0, bp - B), (0, 0)))

    x_spec = pl.BlockSpec((tb, D), lambda i: (i, 0))            # x row tile
    w_spec = pl.BlockSpec((1, D), lambda i: (0, 0))             # weight row (replicated)
    b_spec = pl.BlockSpec(memory_space=pltpu.MemorySpace.SMEM)  # bias scalar in SMEM

    if y is None:
        out = pl.pallas_call(
            linear_kernel,
            out_shape=jax.ShapeDtypeStruct((1, bp), x.dtype),
            grid=(nt,),
            in_specs=[x_spec, w_spec, b_spec],
            out_specs=pl.BlockSpec((1, tb), lambda i: (0, i)),  # lane-dense prediction slab
            compiler_params=pltpu.CompilerParams(dimension_semantics=("parallel",)),
        )(x, w_row, b1)
        return out.reshape(-1)[:B].reshape(B, 1)

    sse = pl.pallas_call(
        functools.partial(linear_mse_kernel, batch=B, tb=tb),
        out_shape=jax.ShapeDtypeStruct((1, 1), jnp.float32),
        grid=(nt,),
        in_specs=[x_spec, w_spec, b_spec,
                  pl.BlockSpec((tb, 1), lambda i: (i, 0))],     # y tile
        out_specs=pl.BlockSpec((1, 1), lambda i: (0, 0),
                               memory_space=pltpu.MemorySpace.SMEM),  # resident SSE accumulator
        compiler_params=pltpu.CompilerParams(dimension_semantics=("arbitrary",)),
    )(x, w_row, b1, y)
    return sse[0, 0] / B


if __name__ == "__main__":
    input_size = 32
    batch = 8

    key = jax.random.PRNGKey(0)
    kx, ky, kw, kb = jax.random.split(key, 4)

    # nn.Linear(input_size, 1) parameter shapes: weight [1, D], bias [1].
    weight = jax.random.normal(kw, (1, input_size), dtype=jnp.float32) * 0.1
    bias = jax.random.normal(kb, (1,), dtype=jnp.float32) * 0.1

    x = jax.random.normal(kx, (batch, input_size), dtype=jnp.float32)
    y = jax.random.normal(ky, (batch, 1), dtype=jnp.float32)

    fwd = jax.jit(torch_model_forward)  # fuses wrapper-side pad/reshape/slice with the pallas_call

    # Path 1: y is None -> linear output [B, 1]
    pred = jax.block_until_ready(fwd(x, weight, bias))

    # Path 2: y given -> scalar MSE loss
    loss = jax.block_until_ready(fwd(x, weight, bias, y))

    # Reference check against plain JAX.
    ref_pred = x @ weight.T + bias
    ref_loss = jnp.mean((ref_pred - y) ** 2)
    assert pred.shape == (batch, 1), "bad prediction shape"
    assert jnp.allclose(pred, ref_pred, atol=1e-5), "linear mismatch"
    assert jnp.allclose(loss, ref_loss, atol=1e-5, rtol=1e-5), "mse mismatch"

    print("KERNEL_OK")
</pallas_src>

<mosaic_0001>
module attributes {stable_mosaic.version = 11 : i64} {
  func.func @linear_kernel(%arg0: i32, %arg1: memref<8x32xf32, #tpu.memory_space<vmem>>, %arg2: memref<1x32xf32, #tpu.memory_space<vmem>>, %arg3: memref<1xf32, #tpu.memory_space<smem>>, %arg4: memref<1x8xf32, #tpu.memory_space<vmem>>) attributes {dimension_semantics = [#tpu.dimension_semantics<parallel>], iteration_bounds = array<i64: 1>, scalar_prefetch = 0 : i64, scratch_operands = 0 : i64, tpu.core_type = #tpu.core_type<tc>, window_params = [{transform_indices = @transform_0, window_bounds = array<i64: 8, 32>}, {pipeline_mode = #tpu.pipeline_mode<synchronous>, transform_indices = @transform_1, window_bounds = array<i64: 1, 32>}, {transform_indices = @transform_2, window_bounds = array<i64: 1>}, {transform_indices = @transform_3, window_bounds = array<i64: 1, 8>}]} {
    %c0 = arith.constant 0 : index
    %c0_0 = arith.constant 0 : index
    %0 = vector.load %arg1[%c0, %c0_0] : memref<8x32xf32, #tpu.memory_space<vmem>>, vector<8x32xf32>
    %c0_1 = arith.constant 0 : index
    %c0_2 = arith.constant 0 : index
    %1 = vector.load %arg2[%c0_1, %c0_2] : memref<1x32xf32, #tpu.memory_space<vmem>>, vector<1x32xf32>
    %2 = vector.broadcast %1 : vector<1x32xf32> to vector<8x32xf32>
    %3 = arith.mulf %0, %2 : vector<8x32xf32>
    %cst = arith.constant dense<0.000000e+00> : vector<8xf32>
    %4 = vector.multi_reduction <add>, %3, %cst [1] : vector<8x32xf32> to vector<8xf32>
    %c0_3 = arith.constant 0 : index
    %5 = memref.load %arg3[%c0_3] : memref<1xf32, #tpu.memory_space<smem>>
    %6 = vector.broadcast %5 : f32 to vector<8xf32>
    %7 = arith.addf %4, %6 : vector<8xf32>
    %8 = vector.shape_cast %7 : vector<8xf32> to vector<1x8xf32>
    %c0_4 = arith.constant 0 : index
    %c0_5 = arith.constant 0 : index
    %9 = vector.load %arg4[%c0_4, %c0_5] : memref<1x8xf32, #tpu.memory_space<vmem>>, vector<1x8xf32>
    tpu.vector_store %arg4[%c0_4, %c0_5], %8 {strides = array<i32>} : memref<1x8xf32, #tpu.memory_space<vmem>>, vector<1x8xf32>,
    return
  }
  func.func @transform_0(%arg0: i32) -> (i32, i32) {
    %c0_i32 = arith.constant 0 : i32
    %c0_i32_0 = arith.constant 0 : i32
    return %arg0, %c0_i32 : i32, i32
  }
  func.func @transform_1(%arg0: i32) -> (i32, i32) {
    %c0_i32 = arith.constant 0 : i32
    %c0_i32_0 = arith.constant 0 : i32
    %c0_i32_1 = arith.constant 0 : i32
    return %c0_i32, %c0_i32_0 : i32, i32
  }
  func.func @transform_2(%arg0: i32) -> i32 {
    %c0_i32 = arith.constant 0 : i32
    %c0_i32_0 = arith.constant 0 : i32
    return %c0_i32 : i32
  }
  func.func @transform_3(%arg0: i32) -> (i32, i32) {
    %c0_i32 = arith.constant 0 : i32
    %c0_i32_0 = arith.constant 0 : i32
    return %c0_i32, %arg0 : i32, i32
  }
}

</mosaic_0001>

<llo_original>
// kernel: torch_model_forward.1
$region0: #{torch_model_forward.1}
  #allocation0 [shape = 'u32[]', space=smem, size = 0x4, offset = 0x4, fixed_abs, tag = 'smem constant byte address 0x4 - core index']
  #allocation1 [shape = 'u32[144,128]{1,0:T(1,128)}', space=vmem, size = 0x12000, scoped, tag = 'internal scratch']
  #allocation2 [shape = 'f32[1]{0:T(128)S(6)}', space=smem, size = 0x200, scoped, tag = 'scoped memory for torch_model_forward.1']
  %s0 = inlined_call_operand.hbm [shape: f32[8,32], index: 0, kind: input, shape index: {}]
  %s1 = inlined_call_operand.vmem [shape: f32[1,32], index: 1, kind: input, shape index: {}]
  %s2 = inlined_call_operand.<no memory space> [shape: f32[1], index: 2, kind: input, shape index: {}]
  %s3 = inlined_call_operand.hbm [shape: f32[1,8], index: 3, kind: output, shape index: {}]
  %s4 = sld [smem:[#allocation0]]
  $region26: #{torch_model_forward.1} parent=0
    _
  %s6 = ssub.s32 1, %s4
  %s7 = scalar_select 0, %s6, %s4
  %8 = sst [smem:[#allocation2]] %s2
  $region1: #{torch_model_forward.1} parent=0
    #allocation3 [shape = 'u8[4096]{0}', space=vmem, size = 0x1000, scoped, tag = 'input window, operand 0, single buffered']
    #allocation4 [shape = 's32[1]{0}', space=sflag, size = 0x4, scoped, tag = 'scoped memory for torch_model_forward.1']
    #allocation5 [shape = 's32[1]{0}', space=sflag, size = 0x4, scoped, tag = 'scoped memory for torch_model_forward.1']
    #allocation6 [shape = 'u8[512]{0}', space=vmem, size = 0x400, scoped, tag = 'output window, operand 0, single buffered']
    %9 = vsyncpa [#allocation4], 0
    %10 = vsyncpa [#allocation5], 0
    // Predicated region
    $region2: #{torch_model_forward.1} parent=1 // pred_check
      _
    $region3: #{torch_model_forward.1} parent=1 // pred_check_branch
      %12 = sbr.rel (0) target = $region5
    $region4: #{torch_model_forward.1} parent=1 // pred_region
      %s14 = ssub.s32 128, 128
      %15 = vsyncadd [#allocation4], %s14
      %s17 = sshll.u32 [#allocation3], 4
      %s18 = int_to_ptr.vmem [resolvable:$true] %s17
      %20 = dma.hbm_to_vmem [thread:$0]  %s0, 128, %s18, [#allocation4]
    $region5: #{torch_model_forward.1} parent=1 // pred_fallthru
      _
    // Predicated region
    $region6: #{torch_model_forward.1} parent=1 // pred_check
      _
    $region7: #{torch_model_forward.1} parent=1 // pred_check_branch
      %22 = sbr.rel (0) target = $region9
    $region8: #{torch_model_forward.1} parent=1 // pred_region
      _
    $region9: #{torch_model_forward.1} parent=1 // pred_fallthru
      _
    // Predicated region
    $region10: #{torch_model_forward.1} parent=1 // pred_check
      _
    $region11: #{torch_model_forward.1} parent=1 // pred_check_branch
      %24 = sbr.rel (0) target = $region13
    $region12: #{torch_model_forward.1} parent=1 // pred_region
      _
    $region13: #{torch_model_forward.1} parent=1 // pred_fallthru
      _
    // Predicated region
    $region14: #{torch_model_forward.1} parent=1 // pred_check
      _
    $region15: #{torch_model_forward.1} parent=1 // pred_check_branch
      %26 = sbr.rel (0) target = $region17
    $region16: #{torch_model_forward.1} parent=1 // pred_region
      %27 = dma.done [#allocation4], 128
    $region17: #{torch_model_forward.1} parent=1 // pred_fallthru
      _
    %v28 = vld [vmem:[#allocation3] sm:$0xff]
    %v29 = vld [vmem:[%s1] sm:$0x1]
    %v31 = vlaneseq
    %v32 = vshrl.u32 %v31, 7
    %v33 = vsub.s32 0, %v32
    %v34 = vrot.slane %v29, %v33
    %v36 = vmul.f32 %v28, %v34
    %vm37 = vcmask 261120
    %v38 = vsel %vm37, %v36, 0.0
    %39 = vadd.xlane.f32.xlu0 %v38
    %v40 = vpop.xlane.xlu0 %39
    %s41 = sld [smem:[#allocation2]]
    %v42 = vstv %s41
    %v43 = vadd.f32 %v40, %v42
    %v45 = vlaneseq
    %v46 = vand.u32 %v45, 127
    %v47 = vlaneseq
    %v48 = vshrl.u32 %v47, 7
    %v49 = vsub.s32 %v46, %v48
    %v50 = vrot.slane %v43, %v49
    %vm52 = vcmask 57344
    %53 = vst.msk [vmem:[#allocation6] sm:$0x1] %vm52, %v50
    // Predicated region
    $region18: #{torch_model_forward.1} parent=1 // pred_check
      _
    $region19: #{torch_model_forward.1} parent=1 // pred_check_branch
      %55 = sbr.rel (0) target = $region21
    $region20: #{torch_model_forward.1} parent=1 // pred_region
      %s57 = ssub.s32 16, 16
      %58 = vsyncadd [#allocation5], %s57
      %s60 = sshll.u32 [#allocation6], 4
      %s61 = int_to_ptr.vmem [resolvable:$true] %s60
      %63 = dma.vmem_to_hbm [thread:$0]  %s61, 16, %s3, [#allocation5]
    $region21: #{torch_model_forward.1} parent=1 // pred_fallthru
      _
    // Predicated region
    $region22: #{torch_model_forward.1} parent=1 // pred_check
      _
    $region23: #{torch_model_forward.1} parent=1 // pred_check_branch
      %65 = sbr.rel (0) target = $region25
    $region24: #{torch_model_forward.1} parent=1 // pred_region
      %66 = dma.done [#allocation5], 16
    $region25: #{torch_model_forward.1} parent=1 // pred_fallthru
      _
    %67 = vsyncpa [#allocation4], 1
    %68 = vsyncpa [#allocation5], 1

</llo_original>
